<compile_context>
chip_gen: v7x
topology: tpu7x:2x2x1
jax: 0.10.0
libtpu: 0.0.40
codegen_flags: <defaults>
</compile_context>

<pallas_src>
import jax
import jax.numpy as jnp
from jax import lax
from jax.experimental import pallas as pl
from jax.experimental.pallas import tpu as pltpu


# Contract the feature (last) axis of both operands: (M, D) . (P, D) -> (M, P).
_CONTRACT_LAST = (((1,), (1,)), ((), ()))


def edge_predictor_kernel(ci_ref, cj_ref, out_ref):
    """One (TM, TN) tile of sigmoid(combine @ combine.T).

    sigmoid(x) = 0.5 + 0.5 * tanh(x / 2): one EUP push + one VALU FMA per
    output element.  The /2 is applied to the (TN, D) column tile (TN*D VALU
    ops) instead of the (TM, TN) logits tile.
    """
    # Exact scaling (power of two), stays in the MXU compute dtype.
    cj_half = cj_ref[...] * jnp.asarray(0.5, cj_ref.dtype)          # (TN, D)

    # half_logits = 0.5 * (combine_i @ combine_j.T); dot_general contracts the
    # feature axis of BOTH operands -> no XLU transpose of the column tile.
    half_logits = lax.dot_general(
        ci_ref[...], cj_half, _CONTRACT_LAST,
        preferred_element_type=jnp.float32)                          # (TM, TN) f32

    out_ref[...] = (0.5 + 0.5 * jnp.tanh(half_logits)).astype(out_ref.dtype)


def edge_predictor(node_embed, weight, bias, *, tile_n=512,
                   compute_dtype=None, out_dtype=jnp.float32,
                   vmem_limit_bytes=None):
    """node_embed: (N, D); weight: (D, D) nn.Linear (out, in); bias: (D,).

    tile_n:        output tile edge (multiple of 128). 512 is the sweet spot on
                   v5e/v6e; use 1024 on v7x. Clipped to the padded node count.
    compute_dtype: e.g. jnp.bfloat16 -> feed the big MXU matmul in bf16
                   (f32 accumulation; the Linear itself stays f32).
    out_dtype:     jnp.float32 (default) or jnp.bfloat16 to halve the dominant
                   N^2 HBM writeback.
    """
    n, d = node_embed.shape
    assert weight.shape == (d, d) and bias.shape == (d,)

    # ---- Linear hoisted out of the kernel: one-shot f32 x @ W.T + b --------
    combine = lax.dot_general(
        node_embed.astype(jnp.float32), weight.astype(jnp.float32),
        _CONTRACT_LAST, preferred_element_type=jnp.float32)
    combine = combine + bias.astype(jnp.float32)[None, :]            # (N, D)
    if compute_dtype is not None:
        combine = combine.astype(compute_dtype)  # halves DMA, 2x MXU on v6e/v7x

    # ---- Tiling -------------------------------------------------------------
    # Tile must be a multiple of 128 (lane-dense stores, (8,128) rule) and no
    # larger than the 128-rounded node count (keeps small demos to one tile).
    tile_n = max(128, (tile_n // 128) * 128)
    tile_n = min(tile_n, pl.cdiv(n, 128) * 128)
    n_pad = pl.cdiv(n, tile_n) * tile_n
    if n_pad != n:
        combine = jnp.pad(combine, ((0, n_pad - n), (0, 0)))
    n_tiles = n_pad // tile_n

    # ---- Cost estimate (advisory): ci is re-fetched only when i changes ----
    in_bytes = jnp.dtype(combine.dtype).itemsize
    out_bytes = jnp.dtype(out_dtype).itemsize
    bytes_accessed = ((n_tiles + n_tiles * n_tiles) * tile_n * d * in_bytes
                      + n_pad * n_pad * out_bytes)
    flops = 2 * n_pad * n_pad * d + 2 * n_pad * n_pad   # big matmul + sigmoid FMA

    out = pl.pallas_call(
        edge_predictor_kernel,
        out_shape=jax.ShapeDtypeStruct((n_pad, n_pad), out_dtype),
        grid_spec=pltpu.PrefetchScalarGridSpec(
            num_scalar_prefetch=0,
            grid=(n_tiles, n_tiles),
            in_specs=[
                pl.BlockSpec((tile_n, d), lambda i, j: (i, 0)),  # row tile i
                pl.BlockSpec((tile_n, d), lambda i, j: (j, 0)),  # col tile j
            ],
            out_specs=pl.BlockSpec((tile_n, tile_n), lambda i, j: (i, j)),
        ),
        compiler_params=pltpu.CompilerParams(
            # Independent output tiles: both axes parallel (v7x megacore).
            dimension_semantics=("parallel", "parallel"),
            vmem_limit_bytes=vmem_limit_bytes,
        ),
        cost_estimate=pl.CostEstimate(
            flops=flops,
            transcendentals=n_pad * n_pad,   # one tanh per output element
            bytes_accessed=bytes_accessed,
        ),
    )(combine, combine)

    return out[:n, :n]


if __name__ == "__main__":
    key = jax.random.PRNGKey(0)
    k_x, k_w, k_b = jax.random.split(key, 3)

    NEMBED = 32

    # Parameters (shared across tests).
    # nn.init.normal_(self.lin.weight, std=0.05)
    weight = 0.05 * jax.random.normal(k_w, (NEMBED, NEMBED), dtype=jnp.float32)
    # nn.Linear default bias init: uniform(-1/sqrt(in), 1/sqrt(in))
    bound = 1.0 / jnp.sqrt(jnp.float32(NEMBED))
    bias = jax.random.uniform(
        k_b, (NEMBED,), dtype=jnp.float32, minval=-bound, maxval=bound)

    def reference(x):
        combine = x @ weight.T + bias
        return jax.nn.sigmoid(combine @ combine.T)

    # 1) Small shape (single tile after the clip), all-f32 path.
    x_small = jax.random.normal(k_x, (16, NEMBED), dtype=jnp.float32)
    ref_small = reference(x_small)
    out_small = jax.block_until_ready(edge_predictor(x_small, weight, bias))
    assert out_small.shape == (16, 16) and out_small.dtype == jnp.float32
    err = float(jnp.max(jnp.abs(out_small - ref_small)))
    assert jnp.allclose(out_small, ref_small, atol=2e-3, rtol=2e-3), (
        "f32 max abs err %f" % err)

    # 2) Multi-tile grid + padding/crop (N=300 is not a multiple of 128).
    x_big = jax.random.normal(jax.random.fold_in(k_x, 1), (300, NEMBED),
                              dtype=jnp.float32)
    ref_big = reference(x_big)
    out_big = jax.block_until_ready(
        edge_predictor(x_big, weight, bias, tile_n=128))
    assert out_big.shape == (300, 300)
    err = float(jnp.max(jnp.abs(out_big - ref_big)))
    assert jnp.allclose(out_big, ref_big, atol=2e-3, rtol=2e-3), (
        "f32 multi-tile max abs err %f" % err)

    # 3) bf16 MXU feed + bf16 output writeback (half the dominant HBM term).
    out_bf16 = jax.block_until_ready(
        edge_predictor(x_big, weight, bias, tile_n=128,
                       compute_dtype=jnp.bfloat16, out_dtype=jnp.bfloat16))
    assert out_bf16.shape == (300, 300) and out_bf16.dtype == jnp.bfloat16
    err = float(jnp.max(jnp.abs(out_bf16.astype(jnp.float32) - ref_big)))
    assert jnp.allclose(out_bf16.astype(jnp.float32), ref_big,
                        atol=2e-2, rtol=2e-2), ("bf16 max abs err %f" % err)

    print("KERNEL_OK")
</pallas_src>

<mosaic_0001>
module attributes {stable_mosaic.version = 11 : i64} {
  func.func @edge_predictor_kernel(%arg0: i32, %arg1: i32, %arg2: memref<128x32xf32, #tpu.memory_space<vmem>>, %arg3: memref<128x32xf32, #tpu.memory_space<vmem>>, %arg4: memref<128x128xf32, #tpu.memory_space<vmem>>) attributes {dimension_semantics = [#tpu.dimension_semantics<parallel>, #tpu.dimension_semantics<parallel>], iteration_bounds = array<i64: 1, 1>, scalar_prefetch = 0 : i64, scratch_operands = 0 : i64, tpu.core_type = #tpu.core_type<tc>, window_params = [{transform_indices = @transform_0, window_bounds = array<i64: 128, 32>}, {transform_indices = @transform_1, window_bounds = array<i64: 128, 32>}, {transform_indices = @transform_2, window_bounds = array<i64: 128, 128>}]} {
    %c0 = arith.constant 0 : index
    %c0_0 = arith.constant 0 : index
    %0 = vector.load %arg3[%c0, %c0_0] : memref<128x32xf32, #tpu.memory_space<vmem>>, vector<128x32xf32>
    %cst = arith.constant 5.000000e-01 : f32
    %1 = vector.broadcast %cst : f32 to vector<128x32xf32>
    %2 = arith.mulf %0, %1 : vector<128x32xf32>
    %c0_1 = arith.constant 0 : index
    %c0_2 = arith.constant 0 : index
    %3 = vector.load %arg2[%c0_1, %c0_2] : memref<128x32xf32, #tpu.memory_space<vmem>>, vector<128x32xf32>
    %cst_3 = arith.constant dense<0.000000e+00> : vector<128x128xf32>
    %4 = tpu.matmul %3, %2, %cst_3 {dimension_numbers = #tpu.dot_dimension_numbers<[1], [1], [0], [0], [0, 0, 1, 0], [], []>} : vector<128x32xf32>, vector<128x32xf32>, vector<128x128xf32> -> vector<128x128xf32>
    %5 = math.tanh %4 : vector<128x128xf32>
    %cst_4 = arith.constant 5.000000e-01 : f32
    %6 = vector.broadcast %cst_4 : f32 to vector<128x128xf32>
    %7 = arith.mulf %6, %5 : vector<128x128xf32>
    %cst_5 = arith.constant 5.000000e-01 : f32
    %8 = vector.broadcast %cst_5 : f32 to vector<128x128xf32>
    %9 = arith.addf %8, %7 : vector<128x128xf32>
    %c0_6 = arith.constant 0 : index
    %c0_7 = arith.constant 0 : index
    %10 = vector.load %arg4[%c0_6, %c0_7] : memref<128x128xf32, #tpu.memory_space<vmem>>, vector<128x128xf32>
    tpu.vector_store %arg4[%c0_6, %c0_7], %9 {strides = array<i32>} : memref<128x128xf32, #tpu.memory_space<vmem>>, vector<128x128xf32>,
    return
  }
  func.func @transform_0(%arg0: i32, %arg1: i32) -> (i32, i32) {
    %c0_i32 = arith.constant 0 : i32
    %c0_i32_0 = arith.constant 0 : i32
    return %arg0, %c0_i32 : i32, i32
  }
  func.func @transform_1(%arg0: i32, %arg1: i32) -> (i32, i32) {
    %c0_i32 = arith.constant 0 : i32
    %c0_i32_0 = arith.constant 0 : i32
    return %arg1, %c0_i32 : i32, i32
  }
  func.func @transform_2(%arg0: i32, %arg1: i32) -> (i32, i32) {
    %c0_i32 = arith.constant 0 : i32
    return %arg0, %arg1 : i32, i32
  }
}

</mosaic_0001>

<llo_original>
// kernel: tpu_custom_call.1
$region0: #{tpu_custom_call.1}
  #allocation0 [shape = 'u32[]', space=smem, size = 0x4, offset = 0x4, fixed_abs, tag = 'smem constant byte address 0x4 - core index']
  #allocation1 [shape = 'u32[144,128]{1,0:T(1,128)}', space=vmem, size = 0x12000, scoped, tag = 'internal scratch']
  %s0 = inlined_call_operand.vmem [shape: f32[128,32], index: 0, kind: input, shape index: {}]
  %s1 = inlined_call_operand.vmem [shape: f32[128,32], index: 1, kind: input, shape index: {}]
  %s2 = inlined_call_operand.hbm [shape: f32[128,128], index: 2, kind: output, shape index: {}]
  %s3 = sld [smem:[#allocation0]]
  $region18: #{tpu_custom_call.1} parent=0
    _
  %s5 = ssub.s32 1, %s3
  %s6 = scalar_select 0, %s5, %s3
  $region1: #{tpu_custom_call.1} parent=0
    #allocation2 [shape = 'u8[65536]{0}', space=vmem, size = 0x10000, scoped, tag = 'output window, operand 0, single buffered']
    #allocation3 [shape = 's32[1]{0}', space=sflag, size = 0x4, scoped, tag = 'scoped memory for tpu_custom_call.1']
    %7 = vsyncpa [#allocation3], 0
    // Predicated region
    $region2: #{tpu_custom_call.1} parent=1 // pred_check
      _
    $region3: #{tpu_custom_call.1} parent=1 // pred_check_branch
      %9 = sbr.rel (0) target = $region5
    $region4: #{tpu_custom_call.1} parent=1 // pred_region
      _
    $region5: #{tpu_custom_call.1} parent=1 // pred_fallthru
      _
    // Predicated region
    $region6: #{tpu_custom_call.1} parent=1 // pred_check
      _
    $region7: #{tpu_custom_call.1} parent=1 // pred_check_branch
      %11 = sbr.rel (0) target = $region9
    $region8: #{tpu_custom_call.1} parent=1 // pred_region
      _
    $region9: #{tpu_custom_call.1} parent=1 // pred_fallthru
      _
    %v12 = vld [vmem:[%s1] sm:$0xff]
    %v13 = vld [vmem:[%s1 + $0x8] sm:$0xff]
    %v14 = vld [vmem:[%s1 + $0x10] sm:$0xff]
    %v15 = vld [vmem:[%s1 + $0x18] sm:$0xff]
    %v16 = vld [vmem:[%s1 + $0x20] sm:$0xff]
    %v17 = vld [vmem:[%s1 + $0x28] sm:$0xff]
    %v18 = vld [vmem:[%s1 + $0x30] sm:$0xff]
    %v19 = vld [vmem:[%s1 + $0x38] sm:$0xff]
    %v20 = vld [vmem:[%s1 + $0x40] sm:$0xff]
    %v21 = vld [vmem:[%s1 + $0x48] sm:$0xff]
    %v22 = vld [vmem:[%s1 + $0x50] sm:$0xff]
    %v23 = vld [vmem:[%s1 + $0x58] sm:$0xff]
    %v24 = vld [vmem:[%s1 + $0x60] sm:$0xff]
    %v25 = vld [vmem:[%s1 + $0x68] sm:$0xff]
    %v26 = vld [vmem:[%s1 + $0x70] sm:$0xff]
    %v27 = vld [vmem:[%s1 + $0x78] sm:$0xff]
    %v28 = vmul.f32 %v12, 0.5
    %v29 = vmul.f32 %v13, 0.5
    %v30 = vmul.f32 %v14, 0.5
    %v31 = vmul.f32 %v15, 0.5
    %v32 = vmul.f32 %v16, 0.5
    %v33 = vmul.f32 %v17, 0.5
    %v34 = vmul.f32 %v18, 0.5
    %v35 = vmul.f32 %v19, 0.5
    %v36 = vmul.f32 %v20, 0.5
    %v37 = vmul.f32 %v21, 0.5
    %v38 = vmul.f32 %v22, 0.5
    %v39 = vmul.f32 %v23, 0.5
    %v40 = vmul.f32 %v24, 0.5
    %v41 = vmul.f32 %v25, 0.5
    %v42 = vmul.f32 %v26, 0.5
    %v43 = vmul.f32 %v27, 0.5
    %v44 = vld [vmem:[%s0] sm:$0xff]
    %v45 = vld [vmem:[%s0 + $0x8] sm:$0xff]
    %v46 = vld [vmem:[%s0 + $0x10] sm:$0xff]
    %v47 = vld [vmem:[%s0 + $0x18] sm:$0xff]
    %v48 = vld [vmem:[%s0 + $0x20] sm:$0xff]
    %v49 = vld [vmem:[%s0 + $0x28] sm:$0xff]
    %v50 = vld [vmem:[%s0 + $0x30] sm:$0xff]
    %v51 = vld [vmem:[%s0 + $0x38] sm:$0xff]
    %v52 = vld [vmem:[%s0 + $0x40] sm:$0xff]
    %v53 = vld [vmem:[%s0 + $0x48] sm:$0xff]
    %v54 = vld [vmem:[%s0 + $0x50] sm:$0xff]
    %v55 = vld [vmem:[%s0 + $0x58] sm:$0xff]
    %v56 = vld [vmem:[%s0 + $0x60] sm:$0xff]
    %v57 = vld [vmem:[%s0 + $0x68] sm:$0xff]
    %v58 = vld [vmem:[%s0 + $0x70] sm:$0xff]
    %v59 = vld [vmem:[%s0 + $0x78] sm:$0xff]
    %vm60 = vcmask 261120
    %v62 = vsel %vm60, %v44, 0
    %v65 = vsel %vm60, %v45, 0
    %v68 = vsel %vm60, %v46, 0
    %v71 = vsel %vm60, %v47, 0
    %v74 = vsel %vm60, %v48, 0
    %v77 = vsel %vm60, %v49, 0
    %v80 = vsel %vm60, %v50, 0
    %v83 = vsel %vm60, %v51, 0
    %v86 = vsel %vm60, %v52, 0
    %v89 = vsel %vm60, %v53, 0
    %v92 = vsel %vm60, %v54, 0
    %v95 = vsel %vm60, %v55, 0
    %v98 = vsel %vm60, %v56, 0
    %v101 = vsel %vm60, %v57, 0
    %v104 = vsel %vm60, %v58, 0
    %v107 = vsel %vm60, %v59, 0
    %v110 = vsel %vm60, %v28, 0
    %v113 = vsel %vm60, %v29, 0
    %v116 = vsel %vm60, %v30, 0
    %v119 = vsel %vm60, %v31, 0
    %v122 = vsel %vm60, %v32, 0
    %v125 = vsel %vm60, %v33, 0
    %v128 = vsel %vm60, %v34, 0
    %v131 = vsel %vm60, %v35, 0
    %v134 = vsel %vm60, %v36, 0
    %v137 = vsel %vm60, %v37, 0
    %v140 = vsel %vm60, %v38, 0
    %v143 = vsel %vm60, %v39, 0
    %v146 = vsel %vm60, %v40, 0
    %v149 = vsel %vm60, %v41, 0
    %v152 = vsel %vm60, %v42, 0
    %v155 = vsel %vm60, %v43, 0
    %157 = vmatprep.subr.mxu0 0.0
    %158 = vmatpush1.xpose.msra.mxu0 %v110
    %159 = vmatprep.subr.mxu0 0.0
    %160 = vmatpush1.xpose.msra.mxu0 %v113
    %161 = vmatprep.subr.mxu0 0.0
    %162 = vmatpush1.xpose.msra.mxu0 %v116
    %163 = vmatprep.subr.mxu0 0.0
    %164 = vmatpush1.xpose.msra.mxu0 %v119
    %165 = vmatprep.subr.mxu0 0.0
    %166 = vmatpush1.xpose.msra.mxu0 %v122
    %167 = vmatprep.subr.mxu0 0.0
    %168 = vmatpush1.xpose.msra.mxu0 %v125
    %169 = vmatprep.subr.mxu0 0.0
    %170 = vmatpush1.xpose.msra.mxu0 %v128
    %171 = vmatprep.subr.mxu0 0.0
    %172 = vmatpush1.xpose.msra.mxu0 %v131
    %173 = vmatprep.subr.mxu0 0.0
    %174 = vmatpush1.xpose.msra.mxu0 %v134
    %175 = vmatprep.subr.mxu0 0.0
    %176 = vmatpush1.xpose.msra.mxu0 %v137
    %177 = vmatprep.subr.mxu0 0.0
    %178 = vmatpush1.xpose.msra.mxu0 %v140
    %179 = vmatprep.subr.mxu0 0.0
    %180 = vmatpush1.xpose.msra.mxu0 %v143
    %181 = vmatprep.subr.mxu0 0.0
    %182 = vmatpush1.xpose.msra.mxu0 %v146
    %183 = vmatprep.subr.mxu0 0.0
    %184 = vmatpush1.xpose.msra.mxu0 %v149
    %185 = vmatprep.subr.mxu0 0.0
    %186 = vmatpush1.xpose.msra.mxu0 %v152
    %187 = vmatprep.subr.mxu0 0.0
    %188 = vmatpush1.xpose.msra.mxu0 %v155
    %189 = vmatprep.subr.mxu0 0.0
    %190 = vmatpush1.xpose.msra.mxu0 0.0
    %191 = vmatprep.subr.mxu0 0.0
    %192 = vmatpush1.xpose.msra.mxu0 0.0
    %193 = vmatprep.subr.mxu0 0.0
    %194 = vmatpush1.xpose.msra.mxu0 0.0
    %195 = vmatprep.subr.mxu0 0.0
    %196 = vmatpush1.xpose.msra.mxu0 0.0
    %197 = vmatprep.subr.mxu0 0.0
    %198 = vmatpush1.xpose.msra.mxu0 0.0
    %199 = vmatprep.subr.mxu0 0.0
    %200 = vmatpush1.xpose.msra.mxu0 0.0
    %201 = vmatprep.subr.mxu0 0.0
    %202 = vmatpush1.xpose.msra.mxu0 0.0
    %203 = vmatprep.subr.mxu0 0.0
    %204 = vmatpush1.xpose.msra.mxu0 0.0
    %205 = vmatprep.subr.mxu0 0.0
    %206 = vmatpush1.xpose.msra.mxu0 0.0
    %207 = vmatprep.subr.mxu0 0.0
    %208 = vmatpush1.xpose.msra.mxu0 0.0
    %209 = vmatprep.subr.mxu0 0.0
    %210 = vmatpush1.xpose.msra.mxu0 0.0
    %211 = vmatprep.subr.mxu0 0.0
    %212 = vmatpush1.xpose.msra.mxu0 0.0
    %213 = vmatprep.subr.mxu0 0.0
    %214 = vmatpush1.xpose.msra.mxu0 0.0
    %215 = vmatprep.subr.mxu0 0.0
    %216 = vmatpush1.xpose.msra.mxu0 0.0
    %217 = vmatprep.subr.mxu0 0.0
    %218 = vmatpush1.xpose.msra.mxu0 0.0
    %219 = vmatprep.subr.mxu0 0.0
    %220 = vmatpush1.xpose.msra.mxu0 0.0
    %221 = vmatprep.mubr.f32.mxu0 0.0
    %222 = vmatmul.mubr.f32.gmra.mrb[0].mxu0 %v62
    %v223 = vpop.f32.mrb[0].mxu0
    %v224 = vadd.f32 0.0, %v223
    %v225 = vpop.f32.mrb[0].mxu0
    %226 = vmatprep.mubr.f32.mxu0 0.0
    %227 = vmatmul.mubr.f32.gmra.mrb[0].mxu0 %v65
    %v228 = vpop.f32.mrb[0].mxu0
    %v229 = vadd.f32 0.0, %v228
    %v230 = vpop.f32.mrb[0].mxu0
    %231 = vmatprep.mubr.f32.mxu0 0.0
    %232 = vmatmul.mubr.f32.gmra.mrb[0].mxu0 %v68
    %v233 = vpop.f32.mrb[0].mxu0
    %v234 = vadd.f32 0.0, %v233
    %v235 = vpop.f32.mrb[0].mxu0
    %236 = vmatprep.mubr.f32.mxu0 0.0
    %237 = vmatmul.mubr.f32.gmra.mrb[0].mxu0 %v71
    %v238 = vpop.f32.mrb[0].mxu0
    %v239 = vadd.f32 0.0, %v238
    %v240 = vpop.f32.mrb[0].mxu0
    %241 = vmatprep.mubr.f32.mxu0 0.0
    %242 = vmatmul.mubr.f32.gmra.mrb[0].mxu0 %v74
    %v243 = vpop.f32.mrb[0].mxu0
    %v244 = vadd.f32 0.0, %v243
    %v245 = vpop.f32.mrb[0].mxu0
    %246 = vmatprep.mubr.f32.mxu0 0.0
    %247 = vmatmul.mubr.f32.gmra.mrb[0].mxu0 %v77
    %v248 = vpop.f32.mrb[0].mxu0
    %v249 = vadd.f32 0.0, %v248
    %v250 = vpop.f32.mrb[0].mxu0
    %251 = vmatprep.mubr.f32.mxu0 0.0
    %252 = vmatmul.mubr.f32.gmra.mrb[0].mxu0 %v80
    %v253 = vpop.f32.mrb[0].mxu0
    %v254 = vadd.f32 0.0, %v253
    %v255 = vpop.f32.mrb[0].mxu0
    %256 = vmatprep.mubr.f32.mxu0 0.0
    %257 = vmatmul.mubr.f32.gmra.mrb[0].mxu0 %v83
    %v258 = vpop.f32.mrb[0].mxu0
    %v259 = vadd.f32 0.0, %v258
    %v260 = vpop.f32.mrb[0].mxu0
    %261 = vmatprep.mubr.f32.mxu0 0.0
    %262 = vmatmul.mubr.f32.gmra.mrb[0].mxu0 %v86
    %v263 = vpop.f32.mrb[0].mxu0
    %v264 = vadd.f32 0.0, %v263
    %v265 = vpop.f32.mrb[0].mxu0
    %266 = vmatprep.mubr.f32.mxu0 0.0
    %267 = vmatmul.mubr.f32.gmra.mrb[0].mxu0 %v89
    %v268 = vpop.f32.mrb[0].mxu0
    %v269 = vadd.f32 0.0, %v268
    %v270 = vpop.f32.mrb[0].mxu0
    %271 = vmatprep.mubr.f32.mxu0 0.0
    %272 = vmatmul.mubr.f32.gmra.mrb[0].mxu0 %v92
    %v273 = vpop.f32.mrb[0].mxu0
    %v274 = vadd.f32 0.0, %v273
    %v275 = vpop.f32.mrb[0].mxu0
    %276 = vmatprep.mubr.f32.mxu0 0.0
    %277 = vmatmul.mubr.f32.gmra.mrb[0].mxu0 %v95
    %v278 = vpop.f32.mrb[0].mxu0
    %v279 = vadd.f32 0.0, %v278
    %v280 = vpop.f32.mrb[0].mxu0
    %281 = vmatprep.mubr.f32.mxu0 0.0
    %282 = vmatmul.mubr.f32.gmra.mrb[0].mxu0 %v98
    %v283 = vpop.f32.mrb[0].mxu0
    %v284 = vadd.f32 0.0, %v283
    %v285 = vpop.f32.mrb[0].mxu0
    %286 = vmatprep.mubr.f32.mxu0 0.0
    %287 = vmatmul.mubr.f32.gmra.mrb[0].mxu0 %v101
    %v288 = vpop.f32.mrb[0].mxu0
    %v289 = vadd.f32 0.0, %v288
    %v290 = vpop.f32.mrb[0].mxu0
    %291 = vmatprep.mubr.f32.mxu0 0.0
    %292 = vmatmul.mubr.f32.gmra.mrb[0].mxu0 %v104
    %v293 = vpop.f32.mrb[0].mxu0
    %v294 = vadd.f32 0.0, %v293
    %v295 = vpop.f32.mrb[0].mxu0
    %296 = vmatprep.mubr.f32.mxu0 0.0
    %297 = vmatmul.mubr.f32.gmra.mrb[0].mxu0 %v107
    %v298 = vpop.f32.mrb[0].mxu0
    %v299 = vadd.f32 0.0, %v298
    %v300 = vpop.f32.mrb[0].mxu0
    %301 = vdwg.mxu0
    %v302 = vtanh.pop %v224
    %v303 = vtanh.pop %v229
    %v304 = vtanh.pop %v234
    %v305 = vtanh.pop %v239
    %v306 = vtanh.pop %v244
    %v307 = vtanh.pop %v249
    %v308 = vtanh.pop %v254
    %v309 = vtanh.pop %v259
    %v310 = vtanh.pop %v264
    %v311 = vtanh.pop %v269
    %v312 = vtanh.pop %v274
    %v313 = vtanh.pop %v279
    %v314 = vtanh.pop %v284
    %v315 = vtanh.pop %v289
    %v316 = vtanh.pop %v294
    %v317 = vtanh.pop %v299
    %v318 = vmul.f32 %v302, 0.5
    %v319 = vmul.f32 %v303, 0.5
    %v320 = vmul.f32 %v304, 0.5
    %v321 = vmul.f32 %v305, 0.5
    %v322 = vmul.f32 %v306, 0.5
    %v323 = vmul.f32 %v307, 0.5
    %v324 = vmul.f32 %v308, 0.5
    %v325 = vmul.f32 %v309, 0.5
    %v326 = vmul.f32 %v310, 0.5
    %v327 = vmul.f32 %v311, 0.5
    %v328 = vmul.f32 %v312, 0.5
    %v329 = vmul.f32 %v313, 0.5
    %v330 = vmul.f32 %v314, 0.5
    %v331 = vmul.f32 %v315, 0.5
    %v332 = vmul.f32 %v316, 0.5
    %v333 = vmul.f32 %v317, 0.5
    %v334 = vadd.f32 %v318, 0.5
    %v335 = vadd.f32 %v319, 0.5
    %v336 = vadd.f32 %v320, 0.5
    %v337 = vadd.f32 %v321, 0.5
    %v338 = vadd.f32 %v322, 0.5
    %v339 = vadd.f32 %v323, 0.5
    %v340 = vadd.f32 %v324, 0.5
    %v341 = vadd.f32 %v325, 0.5
    %v342 = vadd.f32 %v326, 0.5
    %v343 = vadd.f32 %v327, 0.5
    %v344 = vadd.f32 %v328, 0.5
    %v345 = vadd.f32 %v329, 0.5
    %v346 = vadd.f32 %v330, 0.5
    %v347 = vadd.f32 %v331, 0.5
    %v348 = vadd.f32 %v332, 0.5
    %v349 = vadd.f32 %v333, 0.5
    %350 = vst [vmem:[#allocation2] sm:$0xff] %v334
    %351 = vst [vmem:[#allocation2 + $0x8] sm:$0xff] %v335
    %352 = vst [vmem:[#allocation2 + $0x10] sm:$0xff] %v336
    %353 = vst [vmem:[#allocation2 + $0x18] sm:$0xff] %v337
    %354 = vst [vmem:[#allocation2 + $0x20] sm:$0xff] %v338
    %355 = vst [vmem:[#allocation2 + $0x28] sm:$0xff] %v339
    %356 = vst [vmem:[#allocation2 + $0x30] sm:$0xff] %v340
    %357 = vst [vmem:[#allocation2 + $0x38] sm:$0xff] %v341
    %358 = vst [vmem:[#allocation2 + $0x40] sm:$0xff] %v342
    %359 = vst [vmem:[#allocation2 + $0x48] sm:$0xff] %v343
    %360 = vst [vmem:[#allocation2 + $0x50] sm:$0xff] %v344
    %361 = vst [vmem:[#allocation2 + $0x58] sm:$0xff] %v345
    %362 = vst [vmem:[#allocation2 + $0x60] sm:$0xff] %v346
    %363 = vst [vmem:[#allocation2 + $0x68] sm:$0xff] %v347
    %364 = vst [vmem:[#allocation2 + $0x70] sm:$0xff] %v348
    %365 = vst [vmem:[#allocation2 + $0x78] sm:$0xff] %v349
    // Predicated region
    $region10: #{tpu_custom_call.1} parent=1 // pred_check
      _
    $region11: #{tpu_custom_call.1} parent=1 // pred_check_branch
      %367 = sbr.rel (0) target = $region13
    $region12: #{tpu_custom_call.1} parent=1 // pred_region
      %s369 = ssub.s32 2048, 2048
      %370 = vsyncadd [#allocation3], %s369
      %s371 = sshll.u32 [#allocation2], 4
      %s372 = int_to_ptr.vmem [resolvable:$true] %s371
      %377 = dma.vmem_to_hbm [thread:$0]  %s372, 2048, %s2, [#allocation3], 128, 128, 8
    $region13: #{tpu_custom_call.1} parent=1 // pred_fallthru
      _
    // Predicated region
    $region14: #{tpu_custom_call.1} parent=1 // pred_check
      _
    $region15: #{tpu_custom_call.1} parent=1 // pred_check_branch
      %379 = sbr.rel (0) target = $region17
    $region16: #{tpu_custom_call.1} parent=1 // pred_region
      %380 = dma.done [#allocation3], 2048
    $region17: #{tpu_custom_call.1} parent=1 // pred_fallthru
      _
    %381 = vsyncpa [#allocation3], 1

</llo_original>
